<compile_context>
chip_gen: v6e
topology: v6e:2x2x1
jax: 0.10.0
libtpu: 0.0.40
codegen_flags: <defaults>
</compile_context>

<pallas_src>
import math

import jax
import jax.numpy as jnp
from jax import lax
from jax.experimental import pallas as pl
from jax.experimental.pallas import tpu as pltpu


# ----------------------------- tiled linear kernel ---------------------------

def _pick_tile(dim, target, quantum):
    """Largest multiple of `quantum` <= target that divides dim, else full dim.

    TODO(synk): switch to pl.cdiv grids + masking so awkward dims don't fall
    back to a single full-size block.
    """
    if dim <= target:
        return dim
    t = (target // quantum) * quantum
    while t >= quantum:
        if dim % t == 0:
            return t
        t -= quantum
    return dim


def _linear_kernel(x_ref, w_ref, b_ref, o_ref, acc_ref):
    # x: (tm, tk), w: (tk, tn) (weights pre-transposed at init), b: (1, tn).
    @pl.when(pl.program_id(2) == 0)
    def _():
        acc_ref[...] = jnp.zeros_like(acc_ref)

    acc_ref[...] += jnp.dot(x_ref[...], w_ref[...],
                            preferred_element_type=jnp.float32)

    @pl.when(pl.program_id(2) == pl.num_programs(2) - 1)
    def _():
        o_ref[...] = (acc_ref[...] + b_ref[...]).astype(o_ref.dtype)


def linear(x2d, w_t, b, *, tm=512, tn=512, tk=512):
    """y = x2d @ w_t + b  (w_t is the (Din, Dout) pre-transposed nn.Linear weight)."""
    m, din = x2d.shape
    dout = w_t.shape[1]
    btm = _pick_tile(m, tm, 8)
    btn = _pick_tile(dout, tn, 128)
    btk = _pick_tile(din, tk, 128)
    grid = (m // btm, dout // btn, din // btk)
    return pl.pallas_call(
        _linear_kernel,
        out_shape=jax.ShapeDtypeStruct((m, dout), x2d.dtype),
        grid_spec=pltpu.PrefetchScalarGridSpec(
            num_scalar_prefetch=0,
            grid=grid,
            in_specs=[
                pl.BlockSpec((btm, btk), lambda i, j, k: (i, k)),
                pl.BlockSpec((btk, btn), lambda i, j, k: (k, j)),
                pl.BlockSpec((1, btn), lambda i, j, k: (0, j)),
            ],
            out_specs=pl.BlockSpec((btm, btn), lambda i, j, k: (i, j)),
            scratch_shapes=[pltpu.VMEM((btm, btn), jnp.float32)],
        ),
        compiler_params=pltpu.CompilerParams(
            dimension_semantics=("parallel", "parallel", "arbitrary"),
            vmem_limit_bytes=64 * 1024 * 1024),
    )(x2d, w_t, b.reshape(1, dout).astype(jnp.float32))


# ------------------- heads-fused flash attention (online softmax) ------------

def _pick_sk_tile(sk):
    """Key-axis tile for flash-style online softmax (>= 2 tiles when possible)."""
    if sk <= 128 or sk % 128 != 0:
        return sk
    for t in (512, 256, 128):
        if t < sk and sk % t == 0:
            return t
    return sk


def _flash_attn_step(q2d, k2d, v2d, neg_bias, num_heads,
                     o_ref, m_scr, l_scr, acc_scr):
    """One (batch, key-tile) grid step of online-softmax attention.

    q2d: (Sq, D), k2d/v2d: (tsk, D) in head-concatenated layout (D = H*dk);
    neg_bias: (Sq, tsk) additive mask bias (0 / -1e9) or None.  The 1/sqrt(dk)
    scale is folded into the Q projection, so scores need no scaling here.
    Scratch: m/l: (H, Sq, 1) f32, acc: (H, Sq, dk) f32.
    """
    sq, d_model = q2d.shape
    dk = d_model // num_heads
    sk_idx = pl.program_id(1)

    @pl.when(sk_idx == 0)
    def _():
        m_scr[...] = jnp.full_like(m_scr, -jnp.inf)
        l_scr[...] = jnp.zeros_like(l_scr)
        acc_scr[...] = jnp.zeros_like(acc_scr)

    for h in range(num_heads):
        qh = q2d[:, h * dk:(h + 1) * dk]
        kh = k2d[:, h * dk:(h + 1) * dk]
        vh = v2d[:, h * dk:(h + 1) * dk]
        # QK^T on the MXU, contracting the last axis of both operands
        # (no transpose materialization).
        s = lax.dot_general(qh, kh, (((1,), (1,)), ((), ())),
                            preferred_element_type=jnp.float32)
        if neg_bias is not None:
            s = s + neg_bias
        m_prev = m_scr[h]
        m_new = jnp.maximum(m_prev, jnp.max(s, axis=-1, keepdims=True))
        alpha = jnp.exp(m_prev - m_new)
        p = jnp.exp(s - m_new)
        l_scr[h] = alpha * l_scr[h] + jnp.sum(p, axis=-1, keepdims=True)
        acc_scr[h] = alpha * acc_scr[h] + lax.dot_general(
            p.astype(v2d.dtype), vh, (((1,), (0,)), ((), ())),
            preferred_element_type=jnp.float32)
        m_scr[h] = m_new

    @pl.when(sk_idx == pl.num_programs(1) - 1)
    def _():
        outs = []
        for h in range(num_heads):
            l = l_scr[h]
            r = pl.reciprocal(l, approx=True)   # EUP vrcp (otherwise-idle slot)
            r = r * (2.0 - l * r)               # one Newton step -> ~f32 accuracy
            outs.append((acc_scr[h] * r).astype(o_ref.dtype))
        # Single lane-dense (Sq, H*dk) store; no per-head partial stores.
        o_ref[0] = jnp.concatenate(outs, axis=-1)


def _make_attn_kernel(num_heads, d_model, fused_qkv, masked):
    """Build an attention kernel.

    fused_qkv=True: inputs are (1, Sq, 3D) / (1, tsk, 3D) views of the fused
    QKV slab; Q/K/V columns are sliced in VMEM (used when D % 128 != 0 and
    D-wide column BlockSpecs are therefore not legal).
    fused_qkv=False: inputs are already D-wide (1, Sq, D)/(1, tsk, D) tiles.
    """
    D = d_model

    def split_fused(q_src, kv_src):
        return q_src[:, :D], kv_src[:, D:2 * D], kv_src[:, 2 * D:]

    if fused_qkv and masked:
        def kernel(qsrc_ref, kvsrc_ref, m_ref, o_ref, m_scr, l_scr, acc_scr):
            q2d, k2d, v2d = split_fused(qsrc_ref[0], kvsrc_ref[0])
            neg = jnp.where(m_ref[0] == 0, jnp.float32(-1e9), jnp.float32(0.0))
            _flash_attn_step(q2d, k2d, v2d, neg, num_heads,
                             o_ref, m_scr, l_scr, acc_scr)
    elif fused_qkv:
        def kernel(qsrc_ref, kvsrc_ref, o_ref, m_scr, l_scr, acc_scr):
            q2d, k2d, v2d = split_fused(qsrc_ref[0], kvsrc_ref[0])
            _flash_attn_step(q2d, k2d, v2d, None, num_heads,
                             o_ref, m_scr, l_scr, acc_scr)
    elif masked:
        def kernel(q_ref, k_ref, v_ref, m_ref, o_ref, m_scr, l_scr, acc_scr):
            neg = jnp.where(m_ref[0] == 0, jnp.float32(-1e9), jnp.float32(0.0))
            _flash_attn_step(q_ref[0], k_ref[0], v_ref[0], neg, num_heads,
                             o_ref, m_scr, l_scr, acc_scr)
    else:
        def kernel(q_ref, k_ref, v_ref, o_ref, m_scr, l_scr, acc_scr):
            _flash_attn_step(q_ref[0], k_ref[0], v_ref[0], None, num_heads,
                             o_ref, m_scr, l_scr, acc_scr)
    return kernel


def _attention_call(kernel, args, in_specs, *, B, Sq, D, num_heads, n_sk, dtype):
    dk = D // num_heads
    return pl.pallas_call(
        kernel,
        out_shape=jax.ShapeDtypeStruct((B, Sq, D), dtype),
        grid_spec=pltpu.PrefetchScalarGridSpec(
            num_scalar_prefetch=0,
            grid=(B, n_sk),
            in_specs=in_specs,
            out_specs=pl.BlockSpec((1, Sq, D), lambda b, s: (b, 0, 0)),
            scratch_shapes=[
                pltpu.VMEM((num_heads, Sq, 1), jnp.float32),    # running max
                pltpu.VMEM((num_heads, Sq, 1), jnp.float32),    # running denom
                pltpu.VMEM((num_heads, Sq, dk), jnp.float32),   # output accumulator
            ],
        ),
        compiler_params=pltpu.CompilerParams(
            dimension_semantics=("parallel", "arbitrary")),
    )(*args)


def attention_from_columns(q_arr, k_arr, v_arr, mask, *, num_heads, d_model,
                           q_col=0, k_col=0, v_col=0):
    """Heads-fused flash attention; Q/K/V are D-wide column blocks of their arrays.

    q_arr: (B, Sq, n*D), k_arr/v_arr: (B, Sk, n*D); `*_col` selects which
    D-wide column block holds the tensor, so the fused QKV slab can be passed
    three times with no HBM slicing.  Returns the head-merged (B, Sq, D) slab.
    """
    B, Sq, _ = q_arr.shape
    Sk = k_arr.shape[1]
    D = d_model
    tsk = _pick_sk_tile(Sk)
    n_sk = Sk // tsk

    qc, kc, vc = q_col, k_col, v_col
    in_specs = [
        pl.BlockSpec((1, Sq, D), lambda b, s: (b, 0, qc)),    # Q (resident over s)
        pl.BlockSpec((1, tsk, D), lambda b, s: (b, s, kc)),   # K tile
        pl.BlockSpec((1, tsk, D), lambda b, s: (b, s, vc)),   # V tile
    ]
    args = [q_arr, k_arr, v_arr]
    if mask is not None:
        in_specs.append(pl.BlockSpec((1, Sq, tsk), lambda b, s: (b, 0, s)))
        args.append(mask)
    kernel = _make_attn_kernel(num_heads, D, fused_qkv=False,
                               masked=mask is not None)
    return _attention_call(kernel, args, in_specs, B=B, Sq=Sq, D=D,
                           num_heads=num_heads, n_sk=n_sk, dtype=q_arr.dtype)


def attention_from_fused_slab(qkv, mask, *, num_heads, d_model):
    """Heads-fused flash attention reading the whole (B, Sq, 3D) QKV slab.

    Used when D % 128 != 0 (D-wide column BlockSpecs would be illegal); the
    Q/K/V columns are sliced from the VMEM tile inside the kernel.
    """
    B, Sq, threeD = qkv.shape
    D = d_model
    tsk = _pick_sk_tile(Sq)
    n_sk = Sq // tsk

    in_specs = [
        pl.BlockSpec((1, Sq, threeD), lambda b, s: (b, 0, 0)),    # Q source (resident)
        pl.BlockSpec((1, tsk, threeD), lambda b, s: (b, s, 0)),   # K/V source tile
    ]
    args = [qkv, qkv]
    if mask is not None:
        in_specs.append(pl.BlockSpec((1, Sq, tsk), lambda b, s: (b, 0, s)))
        args.append(mask)
    kernel = _make_attn_kernel(num_heads, D, fused_qkv=True,
                               masked=mask is not None)
    return _attention_call(kernel, args, in_specs, B=B, Sq=Sq, D=D,
                           num_heads=num_heads, n_sk=n_sk, dtype=qkv.dtype)


# ----------------------------- module equivalent -----------------------------

class MultiHeadedAttentionPallas:
    """JAX/Pallas equivalent of the PyTorch MultiHeadedAttention module."""

    def __init__(self, num_heads, dim_model, key, compute_dtype=jnp.float32):
        assert dim_model % num_heads == 0
        self.d_k = dim_model // num_heads
        self.num_heads = num_heads
        self.dim_model = dim_model
        # compute_dtype=jnp.bfloat16 is the production setting on v5e/v6e/v7x
        # (~2x MXU + half the DMA; accumulation and softmax stats stay f32) but
        # needs a looser tolerance than the f32 reference check in __main__.
        self.compute_dtype = compute_dtype

        # nn.Linear default init: U(-1/sqrt(fan_in), 1/sqrt(fan_in)).
        bound = 1.0 / math.sqrt(dim_model)
        keys = jax.random.split(key, 8)
        self.weights = [
            jax.random.uniform(keys[2 * i], (dim_model, dim_model),
                               jnp.float32, -bound, bound)
            for i in range(4)
        ]
        self.biases = [
            jax.random.uniform(keys[2 * i + 1], (dim_model,),
                               jnp.float32, -bound, bound)
            for i in range(4)
        ]

        # Kernel-side parameters: pre-transposed to (Din, Dout) (plain x @ w in
        # the matmul kernel) with the 1/sqrt(d_k) softmax scale folded into the
        # Q projection, so the attention kernel never scales scores.
        scale = 1.0 / math.sqrt(self.d_k)
        wq_t = self.weights[0].T * scale
        bq = self.biases[0] * scale
        wk_t, wv_t, wo_t = (w.T for w in self.weights[1:])
        self.w_q_t, self.b_q = wq_t, bq
        self.w_k_t, self.b_k = wk_t, self.biases[1]
        self.w_v_t, self.b_v = wv_t, self.biases[2]
        self.w_o_t, self.b_o = wo_t, self.biases[3]
        # Fused QKV parameters (one matmul: x read from HBM once, MXU sees 3x N).
        self.w_qkv_t = jnp.concatenate([wq_t, wk_t, wv_t], axis=1)   # (D, 3D)
        self.b_qkv = jnp.concatenate([bq, self.biases[1], self.biases[2]])
        # TODO(synk): p_attn is never materialized in HBM; self.attn stays None.
        self.attn = None

    def __call__(self, query, key, value, mask=None):
        B, Sq, D = query.shape
        Sk = key.shape[1]
        H = self.num_heads
        cd = self.compute_dtype

        if mask is not None and mask.shape != (B, Sq, Sk):
            # PyTorch: mask.unsqueeze(1) broadcasts over heads; broadcast over
            # batch/query only if actually needed (no HBM copy otherwise).
            mask = jnp.broadcast_to(mask, (B, Sq, Sk))

        # NOTE: the fused-QKV fast path triggers on object identity; distinct
        # but equal arrays fall back to three separate projections (same math).
        if (query is key) and (key is value):
            x2d = query.reshape(B * Sq, D).astype(cd)
            qkv = linear(x2d, self.w_qkv_t.astype(cd),
                         self.b_qkv).reshape(B, Sq, 3 * D)   # free reshape
            if D % 128 == 0:
                # Exact DMA: Q/K/V selected as D-wide column blocks of the slab.
                x = attention_from_columns(qkv, qkv, qkv, mask,
                                           num_heads=H, d_model=D,
                                           q_col=0, k_col=1, v_col=2)
            else:
                x = attention_from_fused_slab(qkv, mask, num_heads=H, d_model=D)
        else:
            q = linear(query.reshape(B * Sq, D).astype(cd),
                       self.w_q_t.astype(cd), self.b_q).reshape(B, Sq, D)
            k = linear(key.reshape(B * Sk, D).astype(cd),
                       self.w_k_t.astype(cd), self.b_k).reshape(B, Sk, D)
            v = linear(value.reshape(B * Sk, D).astype(cd),
                       self.w_v_t.astype(cd), self.b_v).reshape(B, Sk, D)
            x = attention_from_columns(q, k, v, mask, num_heads=H, d_model=D)

        # x is already the head-merged (B, Sq, D) slab: free reshape, no transpose.
        out = linear(x.reshape(B * Sq, D), self.w_o_t.astype(cd), self.b_o)
        return out.reshape(B, Sq, D)


# --------------------------------- reference ----------------------------------

def _reference(mha, query, key, value, mask):
    """Pure-JAX reference reproducing the PyTorch forward exactly (fp32)."""
    B, Sq, D = query.shape
    Sk = key.shape[1]
    H, dk = mha.num_heads, mha.d_k

    def lin(x, w, b):
        return x @ w.T + b

    def split(x, S):
        return x.reshape(B, S, H, dk).transpose(0, 2, 1, 3)

    q = split(lin(query, mha.weights[0], mha.biases[0]), Sq)
    k = split(lin(key, mha.weights[1], mha.biases[1]), Sk)
    v = split(lin(value, mha.weights[2], mha.biases[2]), Sk)
    scores = jnp.einsum("bhqd,bhkd->bhqk", q, k) / math.sqrt(dk)
    if mask is not None:
        m = jnp.broadcast_to(mask.astype(jnp.float32), (B, Sq, Sk))[:, None]
        scores = jnp.where(m == 0, -1e9, scores)
    p = jax.nn.softmax(scores, axis=-1)
    x = jnp.einsum("bhqk,bhkd->bhqd", p, v)
    x = x.transpose(0, 2, 1, 3).reshape(B, Sq, H * dk)
    return lin(x, mha.weights[3], mha.biases[3])


# ----------------------------------- main --------------------------------------

if __name__ == "__main__":
    root = jax.random.PRNGKey(0)
    k_param, k_x, k_q, k_k, k_v, k_param2, k_x2 = jax.random.split(root, 7)

    # ---- small shapes: B=2, S=8, D=32, H=4 (narrow-D fused-slab path) --------
    B, S, D, H = 2, 8, 32, 4
    mha = MultiHeadedAttentionPallas(num_heads=H, dim_model=D, key=k_param)

    x = jax.random.normal(k_x, (B, S, D), jnp.float32)
    causal = jnp.broadcast_to(jnp.tril(jnp.ones((S, S), jnp.float32)), (B, S, S))

    out = jax.block_until_ready(mha(x, x, x, mask=causal))
    ref = _reference(mha, x, x, x, causal)
    assert out.shape == (B, S, D)
    assert jnp.allclose(out, ref, atol=1e-4, rtol=1e-4), "self-attn mismatch vs reference"

    q_in = jax.random.normal(k_q, (B, S, D), jnp.float32)
    k_in = jax.random.normal(k_k, (B, S, D), jnp.float32)
    v_in = jax.random.normal(k_v, (B, S, D), jnp.float32)
    out2 = jax.block_until_ready(mha(q_in, k_in, v_in, mask=None))
    ref2 = _reference(mha, q_in, k_in, v_in, None)
    assert jnp.allclose(out2, ref2, atol=1e-4, rtol=1e-4), "cross-attn mismatch vs reference"

    # ---- larger shapes: B=1, S=256, D=128, H=4 (column-block specs + 2-tile
    # flash online-softmax path; the causal mask spans a fully-masked key tile).
    B2, S2, D2, H2 = 1, 256, 128, 4
    mha2 = MultiHeadedAttentionPallas(num_heads=H2, dim_model=D2, key=k_param2)
    x2 = jax.random.normal(k_x2, (B2, S2, D2), jnp.float32)
    causal2 = jnp.broadcast_to(jnp.tril(jnp.ones((S2, S2), jnp.float32)),
                               (B2, S2, S2))
    out3 = jax.block_until_ready(mha2(x2, x2, x2, mask=causal2))
    ref3 = _reference(mha2, x2, x2, x2, causal2)
    err = float(jnp.max(jnp.abs(out3 - ref3)))
    assert jnp.allclose(out3, ref3, atol=5e-4, rtol=5e-4), (
        "flash (tiled-Sk) mismatch vs reference, max abs err %g" % err)

    print("KERNEL_OK")
</pallas_src>

<mosaic_0001>
module attributes {stable_mosaic.version = 11 : i64} {
  func.func @_linear_kernel(%arg0: i32, %arg1: i32, %arg2: i32, %arg3: memref<16x32xf32, #tpu.memory_space<vmem>>, %arg4: memref<32x96xf32, #tpu.memory_space<vmem>>, %arg5: memref<1x96xf32, #tpu.memory_space<vmem>>, %arg6: memref<16x96xf32, #tpu.memory_space<vmem>>, %arg7: memref<16x96xf32, #tpu.memory_space<vmem>>) attributes {dimension_semantics = [#tpu.dimension_semantics<parallel>, #tpu.dimension_semantics<parallel>, #tpu.dimension_semantics<arbitrary>], iteration_bounds = array<i64: 1, 1, 1>, scalar_prefetch = 0 : i64, scratch_operands = 1 : i64, tpu.core_type = #tpu.core_type<tc>, window_params = [{transform_indices = @transform_0, window_bounds = array<i64: 16, 32>}, {transform_indices = @transform_1, window_bounds = array<i64: 32, 96>}, {transform_indices = @transform_2, window_bounds = array<i64: 1, 96>}, {transform_indices = @transform_3, window_bounds = array<i64: 16, 96>}]} {
    %c0_i32 = arith.constant 0 : i32
    %0 = arith.cmpi eq, %arg2, %c0_i32 : i32
    %1 = arith.extui %0 : i1 to i32
    %c0_i32_0 = arith.constant 0 : i32
    %2 = arith.cmpi ne, %1, %c0_i32_0 : i32
    scf.if %2 {
      %cst_10 = arith.constant 0.000000e+00 : f32
      %12 = vector.broadcast %cst_10 : f32 to vector<16x96xf32>
      %c0_11 = arith.constant 0 : index
      %c0_12 = arith.constant 0 : index
      %13 = vector.load %arg7[%c0_11, %c0_12] : memref<16x96xf32, #tpu.memory_space<vmem>>, vector<16x96xf32>
      tpu.vector_store %arg7[%c0_11, %c0_12], %12 {strides = array<i32>} : memref<16x96xf32, #tpu.memory_space<vmem>>, vector<16x96xf32>,
    } else {
    }
    %c0 = arith.constant 0 : index
    %c0_1 = arith.constant 0 : index
    %3 = vector.load %arg7[%c0, %c0_1] : memref<16x96xf32, #tpu.memory_space<vmem>>, vector<16x96xf32>
    %c0_2 = arith.constant 0 : index
    %c0_3 = arith.constant 0 : index
    %4 = vector.load %arg3[%c0_2, %c0_3] : memref<16x32xf32, #tpu.memory_space<vmem>>, vector<16x32xf32>
    %c0_4 = arith.constant 0 : index
    %c0_5 = arith.constant 0 : index
    %5 = vector.load %arg4[%c0_4, %c0_5] : memref<32x96xf32, #tpu.memory_space<vmem>>, vector<32x96xf32>
    %cst = arith.constant dense<0.000000e+00> : vector<16x96xf32>
    %6 = tpu.matmul %4, %5, %cst {dimension_numbers = #tpu.dot_dimension_numbers<[1], [0], [0], [1], [0, 0, 1, 1], [], []>} : vector<16x32xf32>, vector<32x96xf32>, vector<16x96xf32> -> vector<16x96xf32>
    %7 = arith.addf %3, %6 : vector<16x96xf32>
    %c0_6 = arith.constant 0 : index
    %c0_7 = arith.constant 0 : index
    %8 = vector.load %arg7[%c0_6, %c0_7] : memref<16x96xf32, #tpu.memory_space<vmem>>, vector<16x96xf32>
    tpu.vector_store %arg7[%c0_6, %c0_7], %7 {strides = array<i32>} : memref<16x96xf32, #tpu.memory_space<vmem>>, vector<16x96xf32>,
    %c0_i32_8 = arith.constant 0 : i32
    %9 = arith.cmpi eq, %arg2, %c0_i32_8 : i32
    %10 = arith.extui %9 : i1 to i32
    %c0_i32_9 = arith.constant 0 : i32
    %11 = arith.cmpi ne, %10, %c0_i32_9 : i32
    scf.if %11 {
      %c0_10 = arith.constant 0 : index
      %c0_11 = arith.constant 0 : index
      %12 = vector.load %arg7[%c0_10, %c0_11] : memref<16x96xf32, #tpu.memory_space<vmem>>, vector<16x96xf32>
      %c0_12 = arith.constant 0 : index
      %c0_13 = arith.constant 0 : index
      %13 = vector.load %arg5[%c0_12, %c0_13] : memref<1x96xf32, #tpu.memory_space<vmem>>, vector<1x96xf32>
      %14 = vector.broadcast %13 : vector<1x96xf32> to vector<16x96xf32>
      %15 = arith.addf %12, %14 : vector<16x96xf32>
      %c0_14 = arith.constant 0 : index
      %c0_15 = arith.constant 0 : index
      %16 = vector.load %arg6[%c0_14, %c0_15] : memref<16x96xf32, #tpu.memory_space<vmem>>, vector<16x96xf32>
      tpu.vector_store %arg6[%c0_14, %c0_15], %15 {strides = array<i32>} : memref<16x96xf32, #tpu.memory_space<vmem>>, vector<16x96xf32>,
    } else {
    }
    return
  }
  func.func @transform_0(%arg0: i32, %arg1: i32, %arg2: i32) -> (i32, i32) {
    %c0_i32 = arith.constant 0 : i32
    return %arg0, %arg2 : i32, i32
  }
  func.func @transform_1(%arg0: i32, %arg1: i32, %arg2: i32) -> (i32, i32) {
    %c0_i32 = arith.constant 0 : i32
    return %arg2, %arg1 : i32, i32
  }
  func.func @transform_2(%arg0: i32, %arg1: i32, %arg2: i32) -> (i32, i32) {
    %c0_i32 = arith.constant 0 : i32
    %c0_i32_0 = arith.constant 0 : i32
    return %c0_i32, %arg1 : i32, i32
  }
  func.func @transform_3(%arg0: i32, %arg1: i32, %arg2: i32) -> (i32, i32) {
    %c0_i32 = arith.constant 0 : i32
    return %arg0, %arg1 : i32, i32
  }
}

</mosaic_0001>

<llo_original>
// kernel: tpu_custom_call.1
$region0: #{tpu_custom_call.1}
  #allocation0 [shape = 'u32[]', space=smem, size = 0x4, offset = 0x4, fixed_abs, tag = 'smem constant byte address 0x4 - core index']
  #allocation1 [shape = 'u32[144,128]{1,0:T(1,128)}', space=vmem, size = 0x12000, scoped, tag = 'internal scratch']
  #allocation2 [shape = 'f32[16,96]{1,0:T(8,128)}', space=vmem, size = 0x2000, scoped, tag = 'scratch operand']
  %s0 = inlined_call_operand.hbm [shape: f32[16,32], index: 0, kind: input, shape index: {}]
  %s1 = inlined_call_operand.hbm [shape: f32[32,96], index: 1, kind: input, shape index: {}]
  %s2 = inlined_call_operand.vmem [shape: f32[1,96], index: 2, kind: input, shape index: {}]
  %s3 = inlined_call_operand.hbm [shape: f32[16,96], index: 3, kind: output, shape index: {}]
  %s4 = sld [smem:[#allocation0]]
  $region38: #{tpu_custom_call.1} parent=0
    _
  %s6 = ssub.s32 1, %s4
  %s7 = scalar_select 0, %s6, %s4
  $region1: #{tpu_custom_call.1} parent=0
    #allocation3 [shape = 'u8[8192]{0}', space=vmem, size = 0x2000, scoped, tag = 'input window, operand 0, single buffered']
    #allocation4 [shape = 's32[1]{0}', space=sflag, size = 0x4, scoped, tag = 'scoped memory for tpu_custom_call.1']
    #allocation5 [shape = 's32[1]{0}', space=sflag, size = 0x4, scoped, tag = 'scoped memory for tpu_custom_call.1']
    #allocation6 [shape = 'u8[16384]{0}', space=vmem, size = 0x4000, scoped, tag = 'input window, operand 1, single buffered']
    #allocation7 [shape = 's32[1]{0}', space=sflag, size = 0x4, scoped, tag = 'scoped memory for tpu_custom_call.1']
    #allocation8 [shape = 'u8[8192]{0}', space=vmem, size = 0x2000, scoped, tag = 'output window, operand 0, single buffered']
    %8 = vsyncpa [#allocation4], 0
    %9 = vsyncpa [#allocation7], 0
    %10 = vsyncpa [#allocation5], 0
    // Predicated region
    $region2: #{tpu_custom_call.1} parent=1 // pred_check
      _
    $region3: #{tpu_custom_call.1} parent=1 // pred_check_branch
      %12 = sbr.rel (0) target = $region5
    $region4: #{tpu_custom_call.1} parent=1 // pred_region
      %s14 = ssub.s32 256, 256
      %15 = vsyncadd [#allocation4], %s14
      %s16 = sshll.u32 [#allocation3], 4
      %s17 = int_to_ptr.vmem [resolvable:$true] %s16
      %22 = dma.hbm_to_vmem [thread:$0]  %s0, 256, %s17, [#allocation4], 128, 128, 8
    $region5: #{tpu_custom_call.1} parent=1 // pred_fallthru
      _
    // Predicated region
    $region6: #{tpu_custom_call.1} parent=1 // pred_check
      _
    $region7: #{tpu_custom_call.1} parent=1 // pred_check_branch
      %24 = sbr.rel (0) target = $region9
    $region8: #{tpu_custom_call.1} parent=1 // pred_region
      %s26 = ssub.s32 512, 512
      %27 = vsyncadd [#allocation7], %s26
      %s28 = sshll.u32 [#allocation6], 4
      %s29 = int_to_ptr.vmem [resolvable:$true] %s28
      %34 = dma.hbm_to_vmem [thread:$0]  %s1, 512, %s29, [#allocation7], 128, 128, 8
    $region9: #{tpu_custom_call.1} parent=1 // pred_fallthru
      _
    // Predicated region
    $region10: #{tpu_custom_call.1} parent=1 // pred_check
      _
    $region11: #{tpu_custom_call.1} parent=1 // pred_check_branch
      %36 = sbr.rel (0) target = $region13
    $region12: #{tpu_custom_call.1} parent=1 // pred_region
      _
    $region13: #{tpu_custom_call.1} parent=1 // pred_fallthru
      _
    // Predicated region
    $region14: #{tpu_custom_call.1} parent=1 // pred_check
      _
    $region15: #{tpu_custom_call.1} parent=1 // pred_check_branch
      %38 = sbr.rel (0) target = $region17
    $region16: #{tpu_custom_call.1} parent=1 // pred_region
      %39 = dma.done [#allocation4], 256
    $region17: #{tpu_custom_call.1} parent=1 // pred_fallthru
      _
    // Predicated region
    $region18: #{tpu_custom_call.1} parent=1 // pred_check
      _
    $region19: #{tpu_custom_call.1} parent=1 // pred_check_branch
      %41 = sbr.rel (0) target = $region21
    $region20: #{tpu_custom_call.1} parent=1 // pred_region
      %42 = dma.done [#allocation7], 512
    $region21: #{tpu_custom_call.1} parent=1 // pred_fallthru
      _
    %p43 = scmp.eq.s32.totalorder 0, 0
    // Predicated region
    $region22: #{tpu_custom_call.1} parent=1 // pred_check
      %p44 = pneg %p43
    $region23: #{tpu_custom_call.1} parent=1 // pred_check_branch
      %46 = sbr.rel (%p44) target = $region25
    $region24: #{tpu_custom_call.1} parent=1 // pred_region
      %vm47 = vcmask 785408
      %48 = vst.msk [vmem:[#allocation2] sm:$0xff] %vm47, 0.0
      %49 = vst.msk [vmem:[#allocation2 + $0x8] sm:$0xff] %vm47, 0.0
    $region25: #{tpu_custom_call.1} parent=1 // pred_fallthru
      _
    %v50 = vld [vmem:[#allocation2] sm:$0xff]
    %v51 = vld [vmem:[#allocation2 + $0x8] sm:$0xff]
    %v52 = vld [vmem:[#allocation3] sm:$0xff]
    %v53 = vld [vmem:[#allocation3 + $0x8] sm:$0xff]
    %v54 = vld [vmem:[#allocation6] sm:$0xff]
    %v55 = vld [vmem:[#allocation6 + $0x8] sm:$0xff]
    %v56 = vld [vmem:[#allocation6 + $0x10] sm:$0xff]
    %v57 = vld [vmem:[#allocation6 + $0x18] sm:$0xff]
    %vm58 = vcmask 261120
    %v60 = vsel %vm58, %v52, 0
    %v63 = vsel %vm58, %v53, 0
    %65 = vmatprep.subr.mxu0 0.0
    %66 = vmatpush1.msra.mxu0 0.0
    %67 = vmatprep.subr.mxu0 0.0
    %68 = vmatpush1.msra.mxu0 0.0
    %69 = vmatprep.subr.mxu0 0.0
    %70 = vmatpush1.msra.mxu0 0.0
    %71 = vmatprep.subr.mxu0 0.0
    %72 = vmatpush1.msra.mxu0 0.0
    %73 = vmatprep.subr.mxu0 0.0
    %74 = vmatpush1.msra.mxu0 0.0
    %75 = vmatprep.subr.mxu0 0.0
    %76 = vmatpush1.msra.mxu0 0.0
    %77 = vmatprep.subr.mxu0 0.0
    %78 = vmatpush1.msra.mxu0 0.0
    %79 = vmatprep.subr.mxu0 0.0
    %80 = vmatpush1.msra.mxu0 0.0
    %81 = vmatprep.subr.mxu0 0.0
    %82 = vmatpush1.msra.mxu0 0.0
    %83 = vmatprep.subr.mxu0 0.0
    %84 = vmatpush1.msra.mxu0 0.0
    %85 = vmatprep.subr.mxu0 0.0
    %86 = vmatpush1.msra.mxu0 0.0
    %87 = vmatprep.subr.mxu0 0.0
    %88 = vmatpush1.msra.mxu0 0.0
    %89 = vmatprep.subr.mxu0 0.0
    %90 = vmatpush1.msra.mxu0 %v57
    %91 = vmatprep.subr.mxu0 0.0
    %92 = vmatpush1.msra.mxu0 %v56
    %93 = vmatprep.subr.mxu0 0.0
    %94 = vmatpush1.msra.mxu0 %v55
    %95 = vmatprep.subr.mxu0 0.0
    %96 = vmatpush1.msra.mxu0 %v54
    %97 = vmatprep.subr.mxu0 0.0
    %98 = vmatpush2.msra.mxu0 0.0
    %99 = vmatprep.subr.mxu0 0.0
    %100 = vmatpush2.msra.mxu0 0.0
    %101 = vmatprep.subr.mxu0 0.0
    %102 = vmatpush2.msra.mxu0 0.0
    %103 = vmatprep.subr.mxu0 0.0
    %104 = vmatpush2.msra.mxu0 0.0
    %105 = vmatprep.subr.mxu0 0.0
    %106 = vmatpush2.msra.mxu0 0.0
    %107 = vmatprep.subr.mxu0 0.0
    %108 = vmatpush2.msra.mxu0 0.0
    %109 = vmatprep.subr.mxu0 0.0
    %110 = vmatpush2.msra.mxu0 0.0
    %111 = vmatprep.subr.mxu0 0.0
    %112 = vmatpush2.msra.mxu0 0.0
    %113 = vmatprep.subr.mxu0 0.0
    %114 = vmatpush2.msra.mxu0 0.0
    %115 = vmatprep.subr.mxu0 0.0
    %116 = vmatpush2.msra.mxu0 0.0
    %117 = vmatprep.subr.mxu0 0.0
    %118 = vmatpush2.msra.mxu0 0.0
    %119 = vmatprep.subr.mxu0 0.0
    %120 = vmatpush2.msra.mxu0 0.0
    %121 = vmatprep.subr.mxu0 0.0
    %122 = vmatpush2.msra.mxu0 0.0
    %123 = vmatprep.subr.mxu0 0.0
    %124 = vmatpush2.msra.mxu0 0.0
    %125 = vmatprep.subr.mxu0 0.0
    %126 = vmatpush2.msra.mxu0 0.0
    %127 = vmatprep.subr.mxu0 0.0
    %128 = vmatpush2.msra.mxu0 0.0
    %129 = vmatprep.mubr.f32.mxu0 0.0
    %130 = vmatmul.mubr.f32.gmra.mxu0 %v60
    %v131 = vpop.f32.mrf.mxu0
    %v132 = vadd.f32 0.0, %v131
    %v133 = vpop.f32.mrf.mxu0
    %134 = vmatprep.mubr.f32.mxu0 0.0
    %135 = vmatmul.mubr.f32.gmra.mxu0 %v63
    %v136 = vpop.f32.mrf.mxu0
    %v137 = vadd.f32 0.0, %v136
    %v138 = vpop.f32.mrf.mxu0
    %139 = vdwg.mxu0
    %v140 = vadd.f32 %v50, %v132
    %v141 = vadd.f32 %v51, %v137
    %vm142 = vcmask 785408
    %143 = vst.msk [vmem:[#allocation2] sm:$0xff] %vm142, %v140
    %144 = vst.msk [vmem:[#allocation2 + $0x8] sm:$0xff] %vm142, %v141
    // Predicated region
    $region26: #{tpu_custom_call.1} parent=1 // pred_check
      %p145 = pneg %p43
    $region27: #{tpu_custom_call.1} parent=1 // pred_check_branch
      %147 = sbr.rel (%p145) target = $region29
    $region28: #{tpu_custom_call.1} parent=1 // pred_region
      %v148 = vld [vmem:[#allocation2] sm:$0xff]
      %v149 = vld [vmem:[#allocation2 + $0x8] sm:$0xff]
      %v150 = vld [vmem:[%s2] sm:$0x1]
      %v152 = vlaneseq
      %v153 = vshrl.u32 %v152, 7
      %v154 = vsub.s32 0, %v153
      %v155 = vrot.slane %v150, %v154
      %v157 = vadd.f32 %v148, %v155
      %v158 = vadd.f32 %v149, %v155
      %159 = vst.msk [vmem:[#allocation8] sm:$0xff] %vm142, %v157
      %160 = vst.msk [vmem:[#allocation8 + $0x8] sm:$0xff] %vm142, %v158
    $region29: #{tpu_custom_call.1} parent=1 // pred_fallthru
      _
    // Predicated region
    $region30: #{tpu_custom_call.1} parent=1 // pred_check
      _
    $region31: #{tpu_custom_call.1} parent=1 // pred_check_branch
      %162 = sbr.rel (0) target = $region33
    $region32: #{tpu_custom_call.1} parent=1 // pred_region
      %s164 = ssub.s32 256, 256
      %165 = vsyncadd [#allocation5], %s164
      %s166 = sshll.u32 [#allocation8], 4
      %s167 = int_to_ptr.vmem [resolvable:$true] %s166
      %172 = dma.vmem_to_hbm [thread:$0]  %s167, 256, %s3, [#allocation5], 128, 128, 8
    $region33: #{tpu_custom_call.1} parent=1 // pred_fallthru
      _
    // Predicated region
    $region34: #{tpu_custom_call.1} parent=1 // pred_check
      _
    $region35: #{tpu_custom_call.1} parent=1 // pred_check_branch
      %174 = sbr.rel (0) target = $region37
    $region36: #{tpu_custom_call.1} parent=1 // pred_region
      %175 = dma.done [#allocation5], 256
    $region37: #{tpu_custom_call.1} parent=1 // pred_fallthru
      _
    %176 = vsyncpa [#allocation4], 1
    %177 = vsyncpa [#allocation7], 1
    %178 = vsyncpa [#allocation5], 1

</llo_original>
